<compile_context>
chip_gen: v7x
topology: tpu7x:2x2x1
jax: 0.10.0
libtpu: 0.0.40
codegen_flags: <defaults>
</compile_context>

<pallas_src>
import functools

import jax
import jax.numpy as jnp
from jax.experimental import pallas as pl
from jax.experimental.pallas import tpu as pltpu

_LANE = 128      # vreg lane width
_SUBLANE = 8     # f32 vreg sublane count


def _round_up(x, m):
    return ((x + m - 1) // m) * m


# ---------------------------------------------------------------------------
# Fused MLP kernel: x -> [bf16 matmul (f32 acc) + f32 bias + ReLU] * n_layers
# ---------------------------------------------------------------------------
def _fused_mlp_kernel(x_ref, w_ref, b_ref, o_ref, *, dims):
    """dims: static tuple of (rows_used, cols_used) per layer into the packed
    weight stack; rows_used always equals the current activation width."""
    h = x_ref[...]                                       # (B, in0) f32
    for i, (fi, fo) in enumerate(dims):                  # static Python loop
        w = w_ref[i, :fi, :fo]                           # (fi, fo) bf16 view
        acc = jnp.dot(h.astype(jnp.bfloat16), w,
                      preferred_element_type=jnp.float32)
        b = b_ref[i, :, :fo]                             # (8, fo) f32, pre-bcast
        nb = acc.shape[0]
        if nb <= _SUBLANE:
            acc = acc + b[:nb]                           # no runtime broadcast
        else:
            acc = acc + b[:1]                            # broadcast over rows
        h = jnp.maximum(acc, 0.0)                        # ReLU after EVERY layer
    o_ref[...] = h.astype(o_ref.dtype)


def fused_mlp(x, w_stack, b_stack, *, dims, block_b):
    batch = x.shape[0]
    out_p = dims[-1][1]
    kernel = functools.partial(_fused_mlp_kernel, dims=dims)
    return pl.pallas_call(
        kernel,
        out_shape=jax.ShapeDtypeStruct((batch, out_p), jnp.float32),
        grid_spec=pltpu.PrefetchScalarGridSpec(
            num_scalar_prefetch=0,
            grid=(pl.cdiv(batch, block_b),),
            in_specs=[
                pl.BlockSpec((block_b, x.shape[1]), lambda i: (i, 0)),
                # whole-net parameter stacks stay resident in VMEM
                pl.BlockSpec(w_stack.shape, lambda i: (0, 0, 0)),
                pl.BlockSpec(b_stack.shape, lambda i: (0, 0, 0)),
            ],
            out_specs=pl.BlockSpec((block_b, out_p), lambda i: (i, 0)),
        ),
        compiler_params=pltpu.CompilerParams(
            dimension_semantics=("parallel",)),
    )(x, w_stack, b_stack)


# ---------------------------------------------------------------------------
# Parameter init (PyTorch nn.Linear default) and one-time layout preparation.
# ---------------------------------------------------------------------------
def init_params(key, layer_sizes):
    """U(-1/sqrt(fan_in), 1/sqrt(fan_in)) like nn.Linear; PyTorch (out,in) layout."""
    params = []
    for i, (fan_in, fan_out) in enumerate(zip(layer_sizes[:-1], layer_sizes[1:])):
        kw, kb = jax.random.split(jax.random.fold_in(key, i))
        bound = 1.0 / jnp.sqrt(float(fan_in))
        w = jax.random.uniform(kw, (fan_out, fan_in), jnp.float32, -bound, bound)
        b = jax.random.uniform(kb, (fan_out,), jnp.float32, -bound, bound)
        params.append((w, b))
    return params


def prepare_params(params):
    """One-time prep (outside the hot path): transpose to (in, out), cast
    weights to bf16, zero-pad feature dims to 128 lanes, pre-broadcast biases
    to 8 sublanes, and pack everything into two stacked operands.

    Returns (w_stack bf16 (L, R, C), b_stack f32 (L, 8, C), dims) where
    dims[i] = (rows_used_i, cols_used_i) are static in-kernel view sizes.
    Zero padding is numerically exact for matmul + bias + ReLU."""
    n = len(params)
    out_p = [_round_up(w.shape[0], _LANE) for (w, _) in params]
    rows_used, cols_used = [], []
    for li, (w, _) in enumerate(params):
        fan_out, fan_in = w.shape
        rows_used.append(fan_in if li == 0 else out_p[li - 1])
        cols_used.append(out_p[li])
    R = _round_up(max(rows_used), 16)    # bf16 sublane-pack granularity
    C = max(cols_used)
    w_stack = jnp.zeros((n, R, C), jnp.bfloat16)
    b_stack = jnp.zeros((n, _SUBLANE, C), jnp.float32)
    for li, (w, b) in enumerate(params):
        fan_out, fan_in = w.shape
        w_stack = w_stack.at[li, :fan_in, :fan_out].set(
            jnp.transpose(w).astype(jnp.bfloat16))
        b_stack = b_stack.at[li, :, :fan_out].set(
            jnp.broadcast_to(b, (_SUBLANE, fan_out)))
    dims = tuple(zip(rows_used, cols_used))
    return w_stack, b_stack, dims


def pick_block_b(batch):
    # Single full-array batch block up to 512 rows (legal for any B); above
    # that, tile the batch so per-step activations stay bounded in VMEM and
    # the parallel grid axis can be sharded across TensorCores.
    return batch if batch <= 512 else 512


# ---------------------------------------------------------------------------
# Forward pass (equivalent of Neural_Net_REINFORCE_Actor.forward / act).
# ---------------------------------------------------------------------------
@functools.partial(jax.jit, static_argnames=("dims", "action_size", "block_b"))
def reinforce_actor_forward(state, w_stack, b_stack, *, dims, action_size, block_b):
    x = state if state.dtype == jnp.float32 else state.astype(jnp.float32)
    out = fused_mlp(x, w_stack, b_stack, dims=dims, block_b=block_b)
    return out[:, :action_size]


# ---------------------------------------------------------------------------
# Pure-JAX references
# ---------------------------------------------------------------------------
def reference_forward_f32(state, params):
    """Matches the PyTorch module in f32 (ReLU on every layer)."""
    h = state.astype(jnp.float32)
    for w, b in params:
        h = jnp.maximum(h @ w.T + b, 0.0)
    return h


def reference_forward_bf16(state, params):
    """Mirrors the kernel numerics: bf16 operands, f32 accumulation."""
    h = state.astype(jnp.float32)
    for w, b in params:
        h = jnp.dot(h.astype(jnp.bfloat16),
                    jnp.transpose(w).astype(jnp.bfloat16),
                    preferred_element_type=jnp.float32) + b
        h = jnp.maximum(h, 0.0)
    return h


if __name__ == "__main__":
    # Small shapes consistent with the module:
    #   state_size=16, hidden layer_sizes=[32, 32], action_size=8, batch=8
    state_size, action_size = 16, 8
    hidden = [32, 32]
    layer_sizes = [state_size] + hidden + [action_size]
    batch = 8

    key = jax.random.PRNGKey(0)
    k_state, k_params = jax.random.split(key)
    state = jax.random.normal(k_state, (batch, state_size), jnp.float32)

    params = init_params(k_params, layer_sizes)        # PyTorch (out,in) layout
    w_stack, b_stack, dims = prepare_params(params)    # one-time packing
    block_b = pick_block_b(batch)

    out = reinforce_actor_forward(state, w_stack, b_stack, dims=dims,
                                  action_size=action_size, block_b=block_b)
    out = jax.block_until_ready(out)

    assert out.shape == (batch, action_size)
    ref_bf16 = reference_forward_bf16(state, params)[:, :action_size]
    ref_f32 = reference_forward_f32(state, params)[:, :action_size]
    assert jnp.allclose(out, ref_bf16, atol=1e-3, rtol=1e-3)
    assert jnp.allclose(out, ref_f32, atol=3e-2, rtol=3e-2)

    # TODO(synk): REINFORCE_loss / Categorical sampling are training-time
    # utilities outside forward()/act(); the module's forward does not sample,
    # so no log-softmax / sampling epilogue is fused into this kernel.
    print("KERNEL_OK")
</pallas_src>

<mosaic_0001>
module attributes {stable_mosaic.version = 11 : i64} {
  func.func @_fused_mlp_kernel(%arg0: i32, %arg1: memref<8x16xf32, #tpu.memory_space<vmem>>, %arg2: memref<3x128x128xbf16, #tpu.memory_space<vmem>>, %arg3: memref<3x8x128xf32, #tpu.memory_space<vmem>>, %arg4: memref<8x128xf32, #tpu.memory_space<vmem>>) attributes {dimension_semantics = [#tpu.dimension_semantics<parallel>], iteration_bounds = array<i64: 1>, scalar_prefetch = 0 : i64, scratch_operands = 0 : i64, tpu.core_type = #tpu.core_type<tc>, window_params = [{transform_indices = @transform_0, window_bounds = array<i64: 8, 16>}, {pipeline_mode = #tpu.pipeline_mode<synchronous>, transform_indices = @transform_1, window_bounds = array<i64: 3, 128, 128>}, {pipeline_mode = #tpu.pipeline_mode<synchronous>, transform_indices = @transform_2, window_bounds = array<i64: 3, 8, 128>}, {transform_indices = @transform_3, window_bounds = array<i64: 8, 128>}]} {
    %c0 = arith.constant 0 : index
    %c0_0 = arith.constant 0 : index
    %0 = vector.load %arg1[%c0, %c0_0] : memref<8x16xf32, #tpu.memory_space<vmem>>, vector<8x16xf32>
    %c0_1 = arith.constant 0 : index
    %c0_2 = arith.constant 0 : index
    %c0_3 = arith.constant 0 : index
    %1 = vector.load %arg2[%c0_1, %c0_2, %c0_3] : memref<3x128x128xbf16, #tpu.memory_space<vmem>>, vector<1x16x128xbf16>
    %2 = vector.shape_cast %1 : vector<1x16x128xbf16> to vector<16x128xbf16>
    %3 = arith.truncf %0 : vector<8x16xf32> to vector<8x16xbf16>
    %cst = arith.constant dense<0.000000e+00> : vector<8x128xf32>
    %4 = tpu.matmul %3, %2, %cst {dimension_numbers = #tpu.dot_dimension_numbers<[1], [0], [0], [1], [0, 0, 1, 1], [], []>} : vector<8x16xbf16>, vector<16x128xbf16>, vector<8x128xf32> -> vector<8x128xf32>
    %c0_4 = arith.constant 0 : index
    %c0_5 = arith.constant 0 : index
    %c0_6 = arith.constant 0 : index
    %5 = vector.load %arg3[%c0_4, %c0_5, %c0_6] : memref<3x8x128xf32, #tpu.memory_space<vmem>>, vector<1x8x128xf32>
    %6 = vector.shape_cast %5 : vector<1x8x128xf32> to vector<8x128xf32>
    %7 = arith.addf %4, %6 : vector<8x128xf32>
    %cst_7 = arith.constant 0.000000e+00 : f32
    %8 = vector.broadcast %cst_7 : f32 to vector<8x128xf32>
    %9 = arith.maximumf %7, %8 : vector<8x128xf32>
    %c1 = arith.constant 1 : index
    %c0_8 = arith.constant 0 : index
    %c0_9 = arith.constant 0 : index
    %10 = vector.load %arg2[%c1, %c0_8, %c0_9] : memref<3x128x128xbf16, #tpu.memory_space<vmem>>, vector<1x128x128xbf16>
    %11 = vector.shape_cast %10 : vector<1x128x128xbf16> to vector<128x128xbf16>
    %12 = arith.truncf %9 : vector<8x128xf32> to vector<8x128xbf16>
    %cst_10 = arith.constant dense<0.000000e+00> : vector<8x128xf32>
    %13 = tpu.matmul %12, %11, %cst_10 {dimension_numbers = #tpu.dot_dimension_numbers<[1], [0], [0], [1], [0, 0, 1, 1], [], []>} : vector<8x128xbf16>, vector<128x128xbf16>, vector<8x128xf32> -> vector<8x128xf32>
    %c1_11 = arith.constant 1 : index
    %c0_12 = arith.constant 0 : index
    %c0_13 = arith.constant 0 : index
    %14 = vector.load %arg3[%c1_11, %c0_12, %c0_13] : memref<3x8x128xf32, #tpu.memory_space<vmem>>, vector<1x8x128xf32>
    %15 = vector.shape_cast %14 : vector<1x8x128xf32> to vector<8x128xf32>
    %16 = arith.addf %13, %15 : vector<8x128xf32>
    %cst_14 = arith.constant 0.000000e+00 : f32
    %17 = vector.broadcast %cst_14 : f32 to vector<8x128xf32>
    %18 = arith.maximumf %16, %17 : vector<8x128xf32>
    %c2 = arith.constant 2 : index
    %c0_15 = arith.constant 0 : index
    %c0_16 = arith.constant 0 : index
    %19 = vector.load %arg2[%c2, %c0_15, %c0_16] : memref<3x128x128xbf16, #tpu.memory_space<vmem>>, vector<1x128x128xbf16>
    %20 = vector.shape_cast %19 : vector<1x128x128xbf16> to vector<128x128xbf16>
    %21 = arith.truncf %18 : vector<8x128xf32> to vector<8x128xbf16>
    %cst_17 = arith.constant dense<0.000000e+00> : vector<8x128xf32>
    %22 = tpu.matmul %21, %20, %cst_17 {dimension_numbers = #tpu.dot_dimension_numbers<[1], [0], [0], [1], [0, 0, 1, 1], [], []>} : vector<8x128xbf16>, vector<128x128xbf16>, vector<8x128xf32> -> vector<8x128xf32>
    %c2_18 = arith.constant 2 : index
    %c0_19 = arith.constant 0 : index
    %c0_20 = arith.constant 0 : index
    %23 = vector.load %arg3[%c2_18, %c0_19, %c0_20] : memref<3x8x128xf32, #tpu.memory_space<vmem>>, vector<1x8x128xf32>
    %24 = vector.shape_cast %23 : vector<1x8x128xf32> to vector<8x128xf32>
    %25 = arith.addf %22, %24 : vector<8x128xf32>
    %cst_21 = arith.constant 0.000000e+00 : f32
    %26 = vector.broadcast %cst_21 : f32 to vector<8x128xf32>
    %27 = arith.maximumf %25, %26 : vector<8x128xf32>
    %c0_22 = arith.constant 0 : index
    %c0_23 = arith.constant 0 : index
    %28 = vector.load %arg4[%c0_22, %c0_23] : memref<8x128xf32, #tpu.memory_space<vmem>>, vector<8x128xf32>
    tpu.vector_store %arg4[%c0_22, %c0_23], %27 {strides = array<i32>} : memref<8x128xf32, #tpu.memory_space<vmem>>, vector<8x128xf32>,
    return
  }
  func.func @transform_0(%arg0: i32) -> (i32, i32) {
    %c0_i32 = arith.constant 0 : i32
    %c0_i32_0 = arith.constant 0 : i32
    return %arg0, %c0_i32 : i32, i32
  }
  func.func @transform_1(%arg0: i32) -> (i32, i32, i32) {
    %c0_i32 = arith.constant 0 : i32
    %c0_i32_0 = arith.constant 0 : i32
    %c0_i32_1 = arith.constant 0 : i32
    %c0_i32_2 = arith.constant 0 : i32
    return %c0_i32, %c0_i32_0, %c0_i32_1 : i32, i32, i32
  }
  func.func @transform_2(%arg0: i32) -> (i32, i32, i32) {
    %c0_i32 = arith.constant 0 : i32
    %c0_i32_0 = arith.constant 0 : i32
    %c0_i32_1 = arith.constant 0 : i32
    %c0_i32_2 = arith.constant 0 : i32
    return %c0_i32, %c0_i32_0, %c0_i32_1 : i32, i32, i32
  }
  func.func @transform_3(%arg0: i32) -> (i32, i32) {
    %c0_i32 = arith.constant 0 : i32
    %c0_i32_0 = arith.constant 0 : i32
    return %arg0, %c0_i32 : i32, i32
  }
}

</mosaic_0001>

<llo_original>
// kernel: reinforce_actor_forward.1
$region0: #{reinforce_actor_forward.1}
  #allocation0 [shape = 'u32[]', space=smem, size = 0x4, offset = 0x4, fixed_abs, tag = 'smem constant byte address 0x4 - core index']
  #allocation1 [shape = 'u32[144,128]{1,0:T(1,128)}', space=vmem, size = 0x12000, scoped, tag = 'internal scratch']
  %s0 = inlined_call_operand.hbm [shape: f32[8,16], index: 0, kind: input, shape index: {}]
  %s1 = inlined_call_operand.hbm [shape: bf16[3,128,128], index: 1, kind: input, shape index: {}]
  %s2 = inlined_call_operand.hbm [shape: f32[3,8,128], index: 2, kind: input, shape index: {}]
  %s3 = inlined_call_operand.hbm [shape: f32[8,128], index: 3, kind: output, shape index: {}]
  %s4 = sld [smem:[#allocation0]]
  $region34: #{reinforce_actor_forward.1} parent=0
    _
  %s6 = ssub.s32 1, %s4
  %s7 = scalar_select 0, %s6, %s4
  $region1: #{reinforce_actor_forward.1} parent=0
    #allocation2 [shape = 'u8[4096]{0}', space=vmem, size = 0x1000, scoped, tag = 'input window, operand 0, single buffered']
    #allocation3 [shape = 's32[1]{0}', space=sflag, size = 0x4, scoped, tag = 'scoped memory for reinforce_actor_forward.1']
    #allocation4 [shape = 's32[1]{0}', space=sflag, size = 0x4, scoped, tag = 'scoped memory for reinforce_actor_forward.1']
    #allocation5 [shape = 'u8[98304]{0}', space=vmem, size = 0x18000, scoped, tag = 'input window, operand 1, single buffered']
    #allocation6 [shape = 's32[1]{0}', space=sflag, size = 0x4, scoped, tag = 'scoped memory for reinforce_actor_forward.1']
    #allocation7 [shape = 'u8[12288]{0}', space=vmem, size = 0x3000, scoped, tag = 'input window, operand 2, single buffered']
    #allocation8 [shape = 'u8[4096]{0}', space=vmem, size = 0x1000, scoped, tag = 'output window, operand 0, single buffered']
    %8 = vsyncpa [#allocation3], 0
    %9 = vsyncpa [#allocation6], 0
    %10 = vsyncpa [#allocation4], 0
    // Predicated region
    $region2: #{reinforce_actor_forward.1} parent=1 // pred_check
      _
    $region3: #{reinforce_actor_forward.1} parent=1 // pred_check_branch
      %12 = sbr.rel (0) target = $region5
    $region4: #{reinforce_actor_forward.1} parent=1 // pred_region
      %s14 = ssub.s32 128, 128
      %15 = vsyncadd [#allocation3], %s14
      %s17 = sshll.u32 [#allocation2], 4
      %s18 = int_to_ptr.vmem [resolvable:$true] %s17
      %20 = dma.hbm_to_vmem [thread:$0]  %s0, 128, %s18, [#allocation3]
    $region5: #{reinforce_actor_forward.1} parent=1 // pred_fallthru
      _
    // Predicated region
    $region6: #{reinforce_actor_forward.1} parent=1 // pred_check
      _
    $region7: #{reinforce_actor_forward.1} parent=1 // pred_check_branch
      %22 = sbr.rel (0) target = $region9
    $region8: #{reinforce_actor_forward.1} parent=1 // pred_region
      %s24 = ssub.s32 3072, 3072
      %25 = vsyncadd [#allocation6], %s24
      %s26 = sshll.u32 [#allocation5], 4
      %s27 = int_to_ptr.vmem [resolvable:$true] %s26
      %32 = dma.hbm_to_vmem [thread:$0]  %s1, 3072, %s27, [#allocation6], 64, 64, 4
    $region9: #{reinforce_actor_forward.1} parent=1 // pred_fallthru
      _
    // Predicated region
    $region10: #{reinforce_actor_forward.1} parent=1 // pred_check
      _
    $region11: #{reinforce_actor_forward.1} parent=1 // pred_check_branch
      %34 = sbr.rel (0) target = $region13
    $region12: #{reinforce_actor_forward.1} parent=1 // pred_region
      %s36 = ssub.s32 384, 384
      %37 = vsyncadd [#allocation6], %s36
      %s38 = sshll.u32 [#allocation7], 4
      %s39 = int_to_ptr.vmem [resolvable:$true] %s38
      %44 = dma.hbm_to_vmem [thread:$0]  %s2, 384, %s39, [#allocation6], 128, 128, 8
    $region13: #{reinforce_actor_forward.1} parent=1 // pred_fallthru
      _
    // Predicated region
    $region14: #{reinforce_actor_forward.1} parent=1 // pred_check
      _
    $region15: #{reinforce_actor_forward.1} parent=1 // pred_check_branch
      %46 = sbr.rel (0) target = $region17
    $region16: #{reinforce_actor_forward.1} parent=1 // pred_region
      %47 = dma.done [#allocation3], 128
    $region17: #{reinforce_actor_forward.1} parent=1 // pred_fallthru
      _
    // Predicated region
    $region18: #{reinforce_actor_forward.1} parent=1 // pred_check
      _
    $region19: #{reinforce_actor_forward.1} parent=1 // pred_check_branch
      %49 = sbr.rel (0) target = $region21
    $region20: #{reinforce_actor_forward.1} parent=1 // pred_region
      %50 = dma.done [#allocation6], 3072
    $region21: #{reinforce_actor_forward.1} parent=1 // pred_fallthru
      _
    // Predicated region
    $region22: #{reinforce_actor_forward.1} parent=1 // pred_check
      _
    $region23: #{reinforce_actor_forward.1} parent=1 // pred_check_branch
      %52 = sbr.rel (0) target = $region25
    $region24: #{reinforce_actor_forward.1} parent=1 // pred_region
      %53 = dma.done [#allocation6], 384
    $region25: #{reinforce_actor_forward.1} parent=1 // pred_fallthru
      _
    %v55 = vld [vmem:[#allocation2] sm:$0xff]
    %v56 = vld [vmem:[#allocation5] sm:$0xf]
    %v57 = vld [vmem:[#allocation5 + $0x4] sm:$0xf]
    %v58 = vpack.c.bf16 %v55, %v55
    %v59 = vld [vmem:[#allocation7] sm:$0xff]
    %v62 = vunpack.c.l.b16 %v56
    %v63 = vunpack.c.l.b16 %v57
    %v64 = vpack.c.b16 %v63, %v62
    %vm66 = vcmask 130048
    %v68 = vsel %vm66, %v58, 0
    %70 = vmatprep.subr.bf16.mxu0 0
    %71 = vmatpush1.bf16.msra.mxu0 %v64
    %72 = vmatprep.subr.bf16.mxu0 0
    %73 = vmatpush1.bf16.msra.mxu0 0
    %74 = vmatprep.subr.bf16.mxu0 0
    %75 = vmatpush1.bf16.msra.mxu0 0
    %76 = vmatprep.subr.bf16.mxu0 0
    %77 = vmatpush1.bf16.msra.mxu0 0
    %78 = vmatprep.subr.bf16.mxu0 0
    %79 = vmatpush1.bf16.msra.mxu0 0
    %80 = vmatprep.subr.bf16.mxu0 0
    %81 = vmatpush1.bf16.msra.mxu0 0
    %82 = vmatprep.subr.bf16.mxu0 0
    %83 = vmatpush1.bf16.msra.mxu0 0
    %84 = vmatprep.subr.bf16.mxu0 0
    %85 = vmatpush1.bf16.msra.mxu0 0
    %86 = vmatprep.subr.bf16.mxu0 0
    %87 = vmatpush1.bf16.msra.mxu0 0
    %88 = vmatprep.subr.bf16.mxu0 0
    %89 = vmatpush1.bf16.msra.mxu0 0
    %90 = vmatprep.subr.bf16.mxu0 0
    %91 = vmatpush1.bf16.msra.mxu0 0
    %92 = vmatprep.subr.bf16.mxu0 0
    %93 = vmatpush1.bf16.msra.mxu0 0
    %94 = vmatprep.subr.bf16.mxu0 0
    %95 = vmatpush1.bf16.msra.mxu0 0
    %96 = vmatprep.subr.bf16.mxu0 0
    %97 = vmatpush1.bf16.msra.mxu0 0
    %98 = vmatprep.subr.bf16.mxu0 0
    %99 = vmatpush1.bf16.msra.mxu0 0
    %100 = vmatprep.subr.bf16.mxu0 0
    %101 = vmatpush1.bf16.msra.mxu0 0
    %102 = vmatprep.mubr.bf16.mxu0 0
    %103 = vmatmul.mubr.bf16.gmra.mrb[0].mxu0 %v68
    %v104 = vpop.f32.mrb[0].mxu0
    %v105 = vadd.f32 %v59, %v104
    %v106 = vpop.f32.mrb[0].mxu0
    %v107 = vpop.f32.mrb[0].mxu0
    %v108 = vpop.f32.mrb[0].mxu0
    %109 = vdwg.mxu0
    %v110 = vmax.f32 %v105, 0.0
    %s111 = scalar_lea.vmem [#allocation5], 64
    %v112 = vld [vmem:[%s111] sm:$0xf]
    %v113 = vld [vmem:[%s111 + $0x4] sm:$0xf]
    %v114 = vld [vmem:[%s111 + $0x8] sm:$0xf]
    %v115 = vld [vmem:[%s111 + $0xc] sm:$0xf]
    %v116 = vld [vmem:[%s111 + $0x10] sm:$0xf]
    %v117 = vld [vmem:[%s111 + $0x14] sm:$0xf]
    %v118 = vld [vmem:[%s111 + $0x18] sm:$0xf]
    %v119 = vld [vmem:[%s111 + $0x1c] sm:$0xf]
    %v120 = vld [vmem:[%s111 + $0x20] sm:$0xf]
    %v121 = vld [vmem:[%s111 + $0x24] sm:$0xf]
    %v122 = vld [vmem:[%s111 + $0x28] sm:$0xf]
    %v123 = vld [vmem:[%s111 + $0x2c] sm:$0xf]
    %v124 = vld [vmem:[%s111 + $0x30] sm:$0xf]
    %v125 = vld [vmem:[%s111 + $0x34] sm:$0xf]
    %v126 = vld [vmem:[%s111 + $0x38] sm:$0xf]
    %v127 = vld [vmem:[%s111 + $0x3c] sm:$0xf]
    %v128 = vpack.c.bf16 %v110, %v110
    %s129 = scalar_lea.vmem [#allocation7], 8
    %v130 = vld [vmem:[%s129] sm:$0xff]
    %v147 = vunpack.c.l.b16 %v112
    %v148 = vunpack.c.l.b16 %v113
    %v149 = vunpack.c.l.b16 %v114
    %v150 = vunpack.c.l.b16 %v115
    %v151 = vunpack.c.l.b16 %v116
    %v152 = vunpack.c.l.b16 %v117
    %v153 = vunpack.c.l.b16 %v118
    %v154 = vunpack.c.l.b16 %v119
    %v155 = vunpack.c.l.b16 %v120
    %v156 = vunpack.c.l.b16 %v121
    %v157 = vunpack.c.l.b16 %v122
    %v158 = vunpack.c.l.b16 %v123
    %v159 = vunpack.c.l.b16 %v124
    %v160 = vunpack.c.l.b16 %v125
    %v161 = vunpack.c.l.b16 %v126
    %v162 = vunpack.c.l.b16 %v127
    %v163 = vpack.c.b16 %v148, %v147
    %v164 = vpack.c.b16 %v150, %v149
    %v165 = vpack.c.b16 %v152, %v151
    %v166 = vpack.c.b16 %v154, %v153
    %v167 = vpack.c.b16 %v156, %v155
    %v168 = vpack.c.b16 %v158, %v157
    %v169 = vpack.c.b16 %v160, %v159
    %v170 = vpack.c.b16 %v162, %v161
    %179 = vmatprep.subr.bf16.mxu0 0
    %180 = vmatpush1.bf16.msra.mxu0 %v163
    %181 = vmatprep.subr.bf16.mxu0 0
    %182 = vmatpush1.bf16.msra.mxu0 %v164
    %183 = vmatprep.subr.bf16.mxu0 0
    %184 = vmatpush1.bf16.msra.mxu0 %v165
    %185 = vmatprep.subr.bf16.mxu0 0
    %186 = vmatpush1.bf16.msra.mxu0 %v166
    %187 = vmatprep.subr.bf16.mxu0 0
    %188 = vmatpush1.bf16.msra.mxu0 %v167
    %189 = vmatprep.subr.bf16.mxu0 0
    %190 = vmatpush1.bf16.msra.mxu0 %v168
    %191 = vmatprep.subr.bf16.mxu0 0
    %192 = vmatpush1.bf16.msra.mxu0 %v169
    %193 = vmatprep.subr.bf16.mxu0 0
    %194 = vmatpush1.bf16.msra.mxu0 %v170
    %195 = vmatprep.subr.bf16.mxu0 0
    %196 = vmatpush1.bf16.msra.mxu0 0
    %197 = vmatprep.subr.bf16.mxu0 0
    %198 = vmatpush1.bf16.msra.mxu0 0
    %199 = vmatprep.subr.bf16.mxu0 0
    %200 = vmatpush1.bf16.msra.mxu0 0
    %201 = vmatprep.subr.bf16.mxu0 0
    %202 = vmatpush1.bf16.msra.mxu0 0
    %203 = vmatprep.subr.bf16.mxu0 0
    %204 = vmatpush1.bf16.msra.mxu0 0
    %205 = vmatprep.subr.bf16.mxu0 0
    %206 = vmatpush1.bf16.msra.mxu0 0
    %207 = vmatprep.subr.bf16.mxu0 0
    %208 = vmatpush1.bf16.msra.mxu0 0
    %209 = vmatprep.subr.bf16.mxu0 0
    %210 = vmatpush1.bf16.msra.mxu0 0
    %211 = vmatprep.mubr.bf16.mxu0 0
    %212 = vmatmul.mubr.bf16.gmra.mrb[0].mxu0 %v128
    %v213 = vpop.f32.mrb[0].mxu0
    %v214 = vadd.f32 %v130, %v213
    %v215 = vpop.f32.mrb[0].mxu0
    %v216 = vpop.f32.mrb[0].mxu0
    %v217 = vpop.f32.mrb[0].mxu0
    %218 = vdwg.mxu0
    %v219 = vmax.f32 %v214, 0.0
    %s220 = scalar_lea.vmem [#allocation5], 128
    %v221 = vld [vmem:[%s220] sm:$0xf]
    %v222 = vld [vmem:[%s220 + $0x4] sm:$0xf]
    %v223 = vld [vmem:[%s220 + $0x8] sm:$0xf]
    %v224 = vld [vmem:[%s220 + $0xc] sm:$0xf]
    %v225 = vld [vmem:[%s220 + $0x10] sm:$0xf]
    %v226 = vld [vmem:[%s220 + $0x14] sm:$0xf]
    %v227 = vld [vmem:[%s220 + $0x18] sm:$0xf]
    %v228 = vld [vmem:[%s220 + $0x1c] sm:$0xf]
    %v229 = vld [vmem:[%s220 + $0x20] sm:$0xf]
    %v230 = vld [vmem:[%s220 + $0x24] sm:$0xf]
    %v231 = vld [vmem:[%s220 + $0x28] sm:$0xf]
    %v232 = vld [vmem:[%s220 + $0x2c] sm:$0xf]
    %v233 = vld [vmem:[%s220 + $0x30] sm:$0xf]
    %v234 = vld [vmem:[%s220 + $0x34] sm:$0xf]
    %v235 = vld [vmem:[%s220 + $0x38] sm:$0xf]
    %v236 = vld [vmem:[%s220 + $0x3c] sm:$0xf]
    %v237 = vpack.c.bf16 %v219, %v219
    %s238 = scalar_lea.vmem [#allocation7], 16
    %v239 = vld [vmem:[%s238] sm:$0xff]
    %v256 = vunpack.c.l.b16 %v221
    %v257 = vunpack.c.l.b16 %v222
    %v258 = vunpack.c.l.b16 %v223
    %v259 = vunpack.c.l.b16 %v224
    %v260 = vunpack.c.l.b16 %v225
    %v261 = vunpack.c.l.b16 %v226
    %v262 = vunpack.c.l.b16 %v227
    %v263 = vunpack.c.l.b16 %v228
    %v264 = vunpack.c.l.b16 %v229
    %v265 = vunpack.c.l.b16 %v230
    %v266 = vunpack.c.l.b16 %v231
    %v267 = vunpack.c.l.b16 %v232
    %v268 = vunpack.c.l.b16 %v233
    %v269 = vunpack.c.l.b16 %v234
    %v270 = vunpack.c.l.b16 %v235
    %v271 = vunpack.c.l.b16 %v236
    %v272 = vpack.c.b16 %v257, %v256
    %v273 = vpack.c.b16 %v259, %v258
    %v274 = vpack.c.b16 %v261, %v260
    %v275 = vpack.c.b16 %v263, %v262
    %v276 = vpack.c.b16 %v265, %v264
    %v277 = vpack.c.b16 %v267, %v266
    %v278 = vpack.c.b16 %v269, %v268
    %v279 = vpack.c.b16 %v271, %v270
    %288 = vmatprep.subr.bf16.mxu0 0
    %289 = vmatpush1.bf16.msra.mxu0 %v272
    %290 = vmatprep.subr.bf16.mxu0 0
    %291 = vmatpush1.bf16.msra.mxu0 %v273
    %292 = vmatprep.subr.bf16.mxu0 0
    %293 = vmatpush1.bf16.msra.mxu0 %v274
    %294 = vmatprep.subr.bf16.mxu0 0
    %295 = vmatpush1.bf16.msra.mxu0 %v275
    %296 = vmatprep.subr.bf16.mxu0 0
    %297 = vmatpush1.bf16.msra.mxu0 %v276
    %298 = vmatprep.subr.bf16.mxu0 0
    %299 = vmatpush1.bf16.msra.mxu0 %v277
    %300 = vmatprep.subr.bf16.mxu0 0
    %301 = vmatpush1.bf16.msra.mxu0 %v278
    %302 = vmatprep.subr.bf16.mxu0 0
    %303 = vmatpush1.bf16.msra.mxu0 %v279
    %304 = vmatprep.subr.bf16.mxu0 0
    %305 = vmatpush1.bf16.msra.mxu0 0
    %306 = vmatprep.subr.bf16.mxu0 0
    %307 = vmatpush1.bf16.msra.mxu0 0
    %308 = vmatprep.subr.bf16.mxu0 0
    %309 = vmatpush1.bf16.msra.mxu0 0
    %310 = vmatprep.subr.bf16.mxu0 0
    %311 = vmatpush1.bf16.msra.mxu0 0
    %312 = vmatprep.subr.bf16.mxu0 0
    %313 = vmatpush1.bf16.msra.mxu0 0
    %314 = vmatprep.subr.bf16.mxu0 0
    %315 = vmatpush1.bf16.msra.mxu0 0
    %316 = vmatprep.subr.bf16.mxu0 0
    %317 = vmatpush1.bf16.msra.mxu0 0
    %318 = vmatprep.subr.bf16.mxu0 0
    %319 = vmatpush1.bf16.msra.mxu0 0
    %320 = vmatprep.mubr.bf16.mxu0 0
    %321 = vmatmul.mubr.bf16.gmra.mrb[0].mxu0 %v237
    %v322 = vpop.f32.mrb[0].mxu0
    %v323 = vadd.f32 %v239, %v322
    %v324 = vpop.f32.mrb[0].mxu0
    %v325 = vpop.f32.mrb[0].mxu0
    %v326 = vpop.f32.mrb[0].mxu0
    %327 = vdwg.mxu0
    %v328 = vmax.f32 %v323, 0.0
    %329 = vst [vmem:[#allocation8] sm:$0xff] %v328
    // Predicated region
    $region26: #{reinforce_actor_forward.1} parent=1 // pred_check
      _
    $region27: #{reinforce_actor_forward.1} parent=1 // pred_check_branch
      %331 = sbr.rel (0) target = $region29
    $region28: #{reinforce_actor_forward.1} parent=1 // pred_region
      %s333 = ssub.s32 128, 128
      %334 = vsyncadd [#allocation4], %s333
      %s336 = sshll.u32 [#allocation8], 4
      %s337 = int_to_ptr.vmem [resolvable:$true] %s336
      %339 = dma.vmem_to_hbm [thread:$0]  %s337, 128, %s3, [#allocation4]
    $region29: #{reinforce_actor_forward.1} parent=1 // pred_fallthru
      _
    // Predicated region
    $region30: #{reinforce_actor_forward.1} parent=1 // pred_check
      _
    $region31: #{reinforce_actor_forward.1} parent=1 // pred_check_branch
      %341 = sbr.rel (0) target = $region33
    $region32: #{reinforce_actor_forward.1} parent=1 // pred_region
      %342 = dma.done [#allocation4], 128
    $region33: #{reinforce_actor_forward.1} parent=1 // pred_fallthru
      _
    %343 = vsyncpa [#allocation3], 1
    %344 = vsyncpa [#allocation6], 1
    %345 = vsyncpa [#allocation4], 1

</llo_original>
